<compile_context>
chip_gen: v7x
topology: tpu7x:2x2x1
jax: 0.10.0
libtpu: 0.0.40
codegen_flags: <defaults>
</compile_context>

<pallas_src>
import functools

import jax
import jax.numpy as jnp
from jax.experimental import pallas as pl
from jax.experimental.pallas import tpu as pltpu

_LANE = 128      # lane width of a vreg
_OUT_PAD = 128   # lane-dense width for the single-column output


def _round_up(x, m):
    return (x + m - 1) // m * m


def _mlp_kernel(x_ref, w_in_ref, b_in_ref, w_hid_ref, b_hid_ref,
                w_out_ref, b_out_ref, o_ref, *, n_hidden_matmuls):
    """Fused MLP forward for one batch tile.

    Matmul operands are in the weights' dtype (bf16 by default); accumulation
    is f32; bias-add and ReLU run on the f32 accumulator.  All weights are
    VMEM-resident across grid steps.
    """
    compute_dtype = w_in_ref.dtype

    # input layer + ReLU
    h = jnp.dot(x_ref[...], w_in_ref[...], preferred_element_type=jnp.float32)
    h = jnp.maximum(h + b_in_ref[...], 0.0)

    # hidden layers + ReLU (static unroll; per-layer weight indexed statically)
    for l in range(n_hidden_matmuls):
        h = jnp.dot(h.astype(compute_dtype), w_hid_ref[l],
                    preferred_element_type=jnp.float32)
        h = jnp.maximum(h + b_hid_ref[l], 0.0)

    # output layer (no activation). w_out is zero-padded to 128 columns so
    # this is a full-width, lane-dense store; the real output lives in col 0.
    out = jnp.dot(h.astype(compute_dtype), w_out_ref[...],
                  preferred_element_type=jnp.float32)
    o_ref[...] = out + b_out_ref[...]


def regression_model_forward(x, params, num_hidden_layers,
                             compute_dtype=jnp.bfloat16, tile_b=512):
    """Wrapper: pads to hardware-friendly shapes, tiles the batch, calls Pallas."""
    w_in, b_in, w_hid, b_hid, w_out, b_out = params
    B, in_features = x.shape
    H = w_in.shape[1]
    n_hid = num_hidden_layers - 1

    # --- pad hidden width to a lane multiple (exact through ReLU, see header).
    Hp = _round_up(H, _LANE)
    pad_h = Hp - H

    w_in_p = jnp.pad(w_in, ((0, 0), (0, pad_h)))
    b_in_p = jnp.pad(b_in, ((0, 0), (0, pad_h)))
    if n_hid > 0:
        w_hid_p = jnp.pad(w_hid, ((0, 0), (0, pad_h), (0, pad_h)))
        b_hid_p = jnp.pad(b_hid, ((0, 0), (0, 0), (0, pad_h)))
    else:
        # Zero-extent blocks don't lower; pass one dummy layer that the kernel
        # never reads (the static unroll count is 0).
        w_hid_p = jnp.zeros((1, Hp, Hp), w_in.dtype)
        b_hid_p = jnp.zeros((1, 1, Hp), b_in.dtype)

    # lane-dense output: pad the single output column to 128 lanes.
    w_out_p = jnp.pad(w_out, ((0, pad_h), (0, _OUT_PAD - w_out.shape[1])))
    b_out_p = jnp.pad(b_out, ((0, 0), (0, _OUT_PAD - b_out.shape[1])))

    # bf16 matmul operands; biases stay f32 (added to the f32 accumulator).
    x_c = x.astype(compute_dtype)
    w_in_c = w_in_p.astype(compute_dtype)
    w_hid_c = w_hid_p.astype(compute_dtype)
    w_out_c = w_out_p.astype(compute_dtype)

    # --- tile the batch (multiple of 16 sublanes for bf16 packing).
    tile_b = max(16, min(tile_b, _round_up(B, 16)))
    Bp = _round_up(B, tile_b)
    if Bp != B:
        x_c = jnp.pad(x_c, ((0, Bp - B), (0, 0)))
    grid = (Bp // tile_b,)

    def resident(shape):
        # Constant index_map -> block fetched once, stays VMEM-resident.
        return pl.BlockSpec(shape, lambda i: tuple(0 for _ in shape))

    x_spec = pl.BlockSpec((tile_b, in_features), lambda i: (i, 0))
    out_spec = pl.BlockSpec((tile_b, _OUT_PAD), lambda i: (i, 0))

    kernel = functools.partial(_mlp_kernel, n_hidden_matmuls=n_hid)

    # advisory cost estimate for XLA's scheduler
    flops = 2 * Bp * (in_features * Hp + n_hid * Hp * Hp + Hp * _OUT_PAD)
    w_item = jnp.dtype(compute_dtype).itemsize
    bytes_accessed = int(
        x_c.size * w_item
        + (w_in_c.size + w_hid_c.size + w_out_c.size) * w_item
        + (b_in_p.size + b_hid_p.size + b_out_p.size) * 4
        + Bp * _OUT_PAD * 4)
    cost = pl.CostEstimate(flops=flops, transcendentals=0,
                           bytes_accessed=bytes_accessed)

    # VMEM budget: resident weights + double-buffered x/out tiles + live f32
    # activations.  Cap at 64 MiB so the same number is safe on v7x.
    # TODO(synk): for very large hidden_size on v7x, stream per-layer weights
    # with pltpu.emit_pipeline instead of keeping the full w_hid resident.
    weight_bytes = ((w_in_c.size + w_hid_c.size + w_out_c.size) * w_item
                    + (b_in_p.size + b_hid_p.size + b_out_p.size) * 4)
    act_bytes = (2 * tile_b * in_features * w_item
                 + 2 * tile_b * _OUT_PAD * 4
                 + 4 * tile_b * Hp * 4)
    vmem_limit = int(min(max(1.5 * (weight_bytes + act_bytes),
                             32 * 1024 * 1024),
                         64 * 1024 * 1024))

    out_pad = pl.pallas_call(
        kernel,
        out_shape=jax.ShapeDtypeStruct((Bp, _OUT_PAD), jnp.float32),
        grid=grid,
        in_specs=[
            x_spec,
            resident(w_in_c.shape),
            resident(b_in_p.shape),
            resident(w_hid_c.shape),
            resident(b_hid_p.shape),
            resident(w_out_c.shape),
            resident(b_out_p.shape),
        ],
        out_specs=out_spec,
        compiler_params=pltpu.CompilerParams(
            dimension_semantics=("parallel",),
            vmem_limit_bytes=vmem_limit),
        cost_estimate=cost,
    )(x_c, w_in_c, b_in_p, w_hid_c, b_hid_p, w_out_c, b_out_p)

    return out_pad[:B, :1]


def init_params(key, input_size, hidden_size, num_hidden_layers):
    """Deterministic PyTorch-style uniform(-1/sqrt(fan_in), 1/sqrt(fan_in)) init."""
    ks = jax.random.split(key, 6)

    def u(k, shape, fan_in):
        bound = 1.0 / jnp.sqrt(jnp.float32(fan_in))
        return jax.random.uniform(k, shape, jnp.float32, -bound, bound)

    n_hid = num_hidden_layers - 1
    w_in = u(ks[0], (input_size, hidden_size), input_size)
    b_in = u(ks[1], (1, hidden_size), input_size)
    w_hid = u(ks[2], (n_hid, hidden_size, hidden_size), hidden_size)
    b_hid = u(ks[3], (n_hid, 1, hidden_size), hidden_size)
    w_out = u(ks[4], (hidden_size, 1), hidden_size)
    b_out = u(ks[5], (1, 1), hidden_size)
    return (w_in, b_in, w_hid, b_hid, w_out, b_out)


def reference_forward(x, params, compute_dtype=jnp.float32):
    """Pure-JAX reference. compute_dtype mirrors the kernel's operand casts."""
    w_in, b_in, w_hid, b_hid, w_out, b_out = params
    cd = compute_dtype
    h = jnp.dot(x.astype(cd), w_in.astype(cd),
                preferred_element_type=jnp.float32)
    h = jnp.maximum(h + b_in, 0.0)
    for l in range(w_hid.shape[0]):
        h = jnp.dot(h.astype(cd), w_hid[l].astype(cd),
                    preferred_element_type=jnp.float32)
        h = jnp.maximum(h + b_hid[l], 0.0)
    out = jnp.dot(h.astype(cd), w_out.astype(cd),
                  preferred_element_type=jnp.float32)
    return out + b_out


if __name__ == "__main__":
    input_size = 16
    hidden_size = 32
    num_hidden_layers = 3
    batch = 8

    key = jax.random.PRNGKey(0)
    k_x, k_p = jax.random.split(key)
    x = jax.random.normal(k_x, (batch, input_size), jnp.float32)
    params = init_params(k_p, input_size, hidden_size, num_hidden_layers)

    out = regression_model_forward(x, params, num_hidden_layers)
    out = jax.block_until_ready(out)

    assert out.shape == (batch, 1)

    # exact-math mirror of the kernel (bf16 operands, f32 accumulation)
    ref_bf16 = reference_forward(x, params, compute_dtype=jnp.bfloat16)
    assert jnp.allclose(out, ref_bf16, atol=1e-3, rtol=1e-3), (out, ref_bf16)

    # sanity vs. full-f32 reference (loose tolerance due to bf16 operands)
    ref_f32 = reference_forward(x, params, compute_dtype=jnp.float32)
    assert jnp.allclose(out, ref_f32, atol=5e-2, rtol=5e-2), (out, ref_f32)

    print("KERNEL_OK")
</pallas_src>

<mosaic_0001>
module attributes {stable_mosaic.version = 11 : i64} {
  func.func @_mlp_kernel(%arg0: i32, %arg1: memref<16x16xbf16, #tpu.memory_space<vmem>>, %arg2: memref<16x128xbf16, #tpu.memory_space<vmem>>, %arg3: memref<1x128xf32, #tpu.memory_space<vmem>>, %arg4: memref<2x128x128xbf16, #tpu.memory_space<vmem>>, %arg5: memref<2x1x128xf32, #tpu.memory_space<vmem>>, %arg6: memref<128x128xbf16, #tpu.memory_space<vmem>>, %arg7: memref<1x128xf32, #tpu.memory_space<vmem>>, %arg8: memref<16x128xf32, #tpu.memory_space<vmem>>) attributes {dimension_semantics = [#tpu.dimension_semantics<parallel>], iteration_bounds = array<i64: 1>, scalar_prefetch = 0 : i64, scratch_operands = 0 : i64, tpu.core_type = #tpu.core_type<tc>, window_params = [{transform_indices = @transform_0, window_bounds = array<i64: 16, 16>}, {pipeline_mode = #tpu.pipeline_mode<synchronous>, transform_indices = @transform_1, window_bounds = array<i64: 16, 128>}, {pipeline_mode = #tpu.pipeline_mode<synchronous>, transform_indices = @transform_2, window_bounds = array<i64: 1, 128>}, {pipeline_mode = #tpu.pipeline_mode<synchronous>, transform_indices = @transform_3, window_bounds = array<i64: 2, 128, 128>}, {pipeline_mode = #tpu.pipeline_mode<synchronous>, transform_indices = @transform_4, window_bounds = array<i64: 2, 1, 128>}, {pipeline_mode = #tpu.pipeline_mode<synchronous>, transform_indices = @transform_5, window_bounds = array<i64: 128, 128>}, {pipeline_mode = #tpu.pipeline_mode<synchronous>, transform_indices = @transform_6, window_bounds = array<i64: 1, 128>}, {transform_indices = @transform_7, window_bounds = array<i64: 16, 128>}]} {
    %c0 = arith.constant 0 : index
    %c0_0 = arith.constant 0 : index
    %0 = vector.load %arg1[%c0, %c0_0] : memref<16x16xbf16, #tpu.memory_space<vmem>>, vector<16x16xbf16>
    %c0_1 = arith.constant 0 : index
    %c0_2 = arith.constant 0 : index
    %1 = vector.load %arg2[%c0_1, %c0_2] : memref<16x128xbf16, #tpu.memory_space<vmem>>, vector<16x128xbf16>
    %cst = arith.constant dense<0.000000e+00> : vector<16x128xf32>
    %2 = tpu.matmul %0, %1, %cst {dimension_numbers = #tpu.dot_dimension_numbers<[1], [0], [0], [1], [0, 0, 1, 1], [], []>} : vector<16x16xbf16>, vector<16x128xbf16>, vector<16x128xf32> -> vector<16x128xf32>
    %c0_3 = arith.constant 0 : index
    %c0_4 = arith.constant 0 : index
    %3 = vector.load %arg3[%c0_3, %c0_4] : memref<1x128xf32, #tpu.memory_space<vmem>>, vector<1x128xf32>
    %4 = vector.broadcast %3 : vector<1x128xf32> to vector<16x128xf32>
    %5 = arith.addf %2, %4 : vector<16x128xf32>
    %cst_5 = arith.constant 0.000000e+00 : f32
    %6 = vector.broadcast %cst_5 : f32 to vector<16x128xf32>
    %7 = arith.maximumf %5, %6 : vector<16x128xf32>
    %8 = arith.truncf %7 : vector<16x128xf32> to vector<16x128xbf16>
    %c0_6 = arith.constant 0 : index
    %c0_7 = arith.constant 0 : index
    %c0_8 = arith.constant 0 : index
    %9 = vector.load %arg4[%c0_6, %c0_7, %c0_8] : memref<2x128x128xbf16, #tpu.memory_space<vmem>>, vector<1x128x128xbf16>
    %10 = vector.shape_cast %9 : vector<1x128x128xbf16> to vector<128x128xbf16>
    %cst_9 = arith.constant dense<0.000000e+00> : vector<16x128xf32>
    %11 = tpu.matmul %8, %10, %cst_9 {dimension_numbers = #tpu.dot_dimension_numbers<[1], [0], [0], [1], [0, 0, 1, 1], [], []>} : vector<16x128xbf16>, vector<128x128xbf16>, vector<16x128xf32> -> vector<16x128xf32>
    %c0_10 = arith.constant 0 : index
    %c0_11 = arith.constant 0 : index
    %c0_12 = arith.constant 0 : index
    %12 = vector.load %arg5[%c0_10, %c0_11, %c0_12] : memref<2x1x128xf32, #tpu.memory_space<vmem>>, vector<1x1x128xf32>
    %13 = vector.shape_cast %12 : vector<1x1x128xf32> to vector<1x128xf32>
    %14 = vector.broadcast %13 : vector<1x128xf32> to vector<16x128xf32>
    %15 = arith.addf %11, %14 : vector<16x128xf32>
    %cst_13 = arith.constant 0.000000e+00 : f32
    %16 = vector.broadcast %cst_13 : f32 to vector<16x128xf32>
    %17 = arith.maximumf %15, %16 : vector<16x128xf32>
    %18 = arith.truncf %17 : vector<16x128xf32> to vector<16x128xbf16>
    %c1 = arith.constant 1 : index
    %c0_14 = arith.constant 0 : index
    %c0_15 = arith.constant 0 : index
    %19 = vector.load %arg4[%c1, %c0_14, %c0_15] : memref<2x128x128xbf16, #tpu.memory_space<vmem>>, vector<1x128x128xbf16>
    %20 = vector.shape_cast %19 : vector<1x128x128xbf16> to vector<128x128xbf16>
    %cst_16 = arith.constant dense<0.000000e+00> : vector<16x128xf32>
    %21 = tpu.matmul %18, %20, %cst_16 {dimension_numbers = #tpu.dot_dimension_numbers<[1], [0], [0], [1], [0, 0, 1, 1], [], []>} : vector<16x128xbf16>, vector<128x128xbf16>, vector<16x128xf32> -> vector<16x128xf32>
    %c1_17 = arith.constant 1 : index
    %c0_18 = arith.constant 0 : index
    %c0_19 = arith.constant 0 : index
    %22 = vector.load %arg5[%c1_17, %c0_18, %c0_19] : memref<2x1x128xf32, #tpu.memory_space<vmem>>, vector<1x1x128xf32>
    %23 = vector.shape_cast %22 : vector<1x1x128xf32> to vector<1x128xf32>
    %24 = vector.broadcast %23 : vector<1x128xf32> to vector<16x128xf32>
    %25 = arith.addf %21, %24 : vector<16x128xf32>
    %cst_20 = arith.constant 0.000000e+00 : f32
    %26 = vector.broadcast %cst_20 : f32 to vector<16x128xf32>
    %27 = arith.maximumf %25, %26 : vector<16x128xf32>
    %28 = arith.truncf %27 : vector<16x128xf32> to vector<16x128xbf16>
    %c0_21 = arith.constant 0 : index
    %c0_22 = arith.constant 0 : index
    %29 = vector.load %arg6[%c0_21, %c0_22] : memref<128x128xbf16, #tpu.memory_space<vmem>>, vector<128x128xbf16>
    %cst_23 = arith.constant dense<0.000000e+00> : vector<16x128xf32>
    %30 = tpu.matmul %28, %29, %cst_23 {dimension_numbers = #tpu.dot_dimension_numbers<[1], [0], [0], [1], [0, 0, 1, 1], [], []>} : vector<16x128xbf16>, vector<128x128xbf16>, vector<16x128xf32> -> vector<16x128xf32>
    %c0_24 = arith.constant 0 : index
    %c0_25 = arith.constant 0 : index
    %31 = vector.load %arg7[%c0_24, %c0_25] : memref<1x128xf32, #tpu.memory_space<vmem>>, vector<1x128xf32>
    %32 = vector.broadcast %31 : vector<1x128xf32> to vector<16x128xf32>
    %33 = arith.addf %30, %32 : vector<16x128xf32>
    %c0_26 = arith.constant 0 : index
    %c0_27 = arith.constant 0 : index
    %34 = vector.load %arg8[%c0_26, %c0_27] : memref<16x128xf32, #tpu.memory_space<vmem>>, vector<16x128xf32>
    tpu.vector_store %arg8[%c0_26, %c0_27], %33 {strides = array<i32>} : memref<16x128xf32, #tpu.memory_space<vmem>>, vector<16x128xf32>,
    return
  }
  func.func @transform_0(%arg0: i32) -> (i32, i32) {
    %c0_i32 = arith.constant 0 : i32
    %c0_i32_0 = arith.constant 0 : i32
    return %arg0, %c0_i32 : i32, i32
  }
  func.func @transform_1(%arg0: i32) -> (i32, i32) {
    %c0_i32 = arith.constant 0 : i32
    %c0_i32_0 = arith.constant 0 : i32
    %c0_i32_1 = arith.constant 0 : i32
    return %c0_i32, %c0_i32_0 : i32, i32
  }
  func.func @transform_2(%arg0: i32) -> (i32, i32) {
    %c0_i32 = arith.constant 0 : i32
    %c0_i32_0 = arith.constant 0 : i32
    %c0_i32_1 = arith.constant 0 : i32
    return %c0_i32, %c0_i32_0 : i32, i32
  }
  func.func @transform_3(%arg0: i32) -> (i32, i32, i32) {
    %c0_i32 = arith.constant 0 : i32
    %c0_i32_0 = arith.constant 0 : i32
    %c0_i32_1 = arith.constant 0 : i32
    %c0_i32_2 = arith.constant 0 : i32
    return %c0_i32, %c0_i32_0, %c0_i32_1 : i32, i32, i32
  }
  func.func @transform_4(%arg0: i32) -> (i32, i32, i32) {
    %c0_i32 = arith.constant 0 : i32
    %c0_i32_0 = arith.constant 0 : i32
    %c0_i32_1 = arith.constant 0 : i32
    %c0_i32_2 = arith.constant 0 : i32
    return %c0_i32, %c0_i32_0, %c0_i32_1 : i32, i32, i32
  }
  func.func @transform_5(%arg0: i32) -> (i32, i32) {
    %c0_i32 = arith.constant 0 : i32
    %c0_i32_0 = arith.constant 0 : i32
    %c0_i32_1 = arith.constant 0 : i32
    return %c0_i32, %c0_i32_0 : i32, i32
  }
  func.func @transform_6(%arg0: i32) -> (i32, i32) {
    %c0_i32 = arith.constant 0 : i32
    %c0_i32_0 = arith.constant 0 : i32
    %c0_i32_1 = arith.constant 0 : i32
    return %c0_i32, %c0_i32_0 : i32, i32
  }
  func.func @transform_7(%arg0: i32) -> (i32, i32) {
    %c0_i32 = arith.constant 0 : i32
    %c0_i32_0 = arith.constant 0 : i32
    return %arg0, %c0_i32 : i32, i32
  }
}

</mosaic_0001>

<llo_original>
// kernel: tpu_custom_call.1
$region0: #{tpu_custom_call.1}
  #allocation0 [shape = 'u32[]', space=smem, size = 0x4, offset = 0x4, fixed_abs, tag = 'smem constant byte address 0x4 - core index']
  #allocation1 [shape = 'u32[144,128]{1,0:T(1,128)}', space=vmem, size = 0x12000, scoped, tag = 'internal scratch']
  %s0 = inlined_call_operand.hbm [shape: bf16[16,16], index: 0, kind: input, shape index: {}]
  %s1 = inlined_call_operand.hbm [shape: bf16[16,128], index: 1, kind: input, shape index: {}]
  %s2 = inlined_call_operand.vmem [shape: f32[1,128], index: 2, kind: input, shape index: {}]
  %s3 = inlined_call_operand.hbm [shape: bf16[2,128,128], index: 3, kind: input, shape index: {}]
  %s4 = inlined_call_operand.vmem [shape: f32[2,1,128], index: 4, kind: input, shape index: {}]
  %s5 = inlined_call_operand.hbm [shape: bf16[128,128], index: 5, kind: input, shape index: {}]
  %s6 = inlined_call_operand.vmem [shape: f32[1,128], index: 6, kind: input, shape index: {}]
  %s7 = inlined_call_operand.hbm [shape: f32[16,128], index: 7, kind: output, shape index: {}]
  %s8 = sld [smem:[#allocation0]]
  $region54: #{tpu_custom_call.1} parent=0
    _
  %s10 = ssub.s32 1, %s8
  %s11 = scalar_select 0, %s10, %s8
  $region1: #{tpu_custom_call.1} parent=0
    #allocation2 [shape = 'u8[4096]{0}', space=vmem, size = 0x1000, scoped, tag = 'input window, operand 0, single buffered']
    #allocation3 [shape = 's32[1]{0}', space=sflag, size = 0x4, scoped, tag = 'scoped memory for tpu_custom_call.1']
    #allocation4 [shape = 's32[1]{0}', space=sflag, size = 0x4, scoped, tag = 'scoped memory for tpu_custom_call.1']
    #allocation5 [shape = 'u8[4096]{0}', space=vmem, size = 0x1000, scoped, tag = 'input window, operand 1, single buffered']
    #allocation6 [shape = 's32[1]{0}', space=sflag, size = 0x4, scoped, tag = 'scoped memory for tpu_custom_call.1']
    #allocation7 [shape = 'u8[65536]{0}', space=vmem, size = 0x10000, scoped, tag = 'input window, operand 3, single buffered']
    #allocation8 [shape = 'u8[32768]{0}', space=vmem, size = 0x8000, scoped, tag = 'input window, operand 5, single buffered']
    #allocation9 [shape = 's32[1]{0}', space=sflag, size = 0x4, scoped, tag = 'scoped memory for tpu_custom_call.1']
    #allocation10 [shape = 'u8[8192]{0}', space=vmem, size = 0x2000, scoped, tag = 'output window, operand 0, single buffered']
    %12 = vsyncpa [#allocation3], 0
    %13 = vsyncpa [#allocation6], 0
    %14 = vsyncpa [#allocation9], 0
    %15 = vsyncpa [#allocation4], 0
    // Predicated region
    $region2: #{tpu_custom_call.1} parent=1 // pred_check
      _
    $region3: #{tpu_custom_call.1} parent=1 // pred_check_branch
      %17 = sbr.rel (0) target = $region5
    $region4: #{tpu_custom_call.1} parent=1 // pred_region
      %s19 = ssub.s32 128, 128
      %20 = vsyncadd [#allocation3], %s19
      %s21 = sshll.u32 [#allocation2], 4
      %s22 = int_to_ptr.vmem [resolvable:$true] %s21
      %27 = dma.hbm_to_vmem [thread:$0]  %s0, 128, %s22, [#allocation3], 64, 64, 4
    $region5: #{tpu_custom_call.1} parent=1 // pred_fallthru
      _
    // Predicated region
    $region6: #{tpu_custom_call.1} parent=1 // pred_check
      _
    $region7: #{tpu_custom_call.1} parent=1 // pred_check_branch
      %29 = sbr.rel (0) target = $region9
    $region8: #{tpu_custom_call.1} parent=1 // pred_region
      %s31 = ssub.s32 128, 128
      %32 = vsyncadd [#allocation6], %s31
      %s33 = sshll.u32 [#allocation5], 4
      %s34 = int_to_ptr.vmem [resolvable:$true] %s33
      %39 = dma.hbm_to_vmem [thread:$0]  %s1, 128, %s34, [#allocation6], 64, 64, 4
    $region9: #{tpu_custom_call.1} parent=1 // pred_fallthru
      _
    // Predicated region
    $region10: #{tpu_custom_call.1} parent=1 // pred_check
      _
    $region11: #{tpu_custom_call.1} parent=1 // pred_check_branch
      %41 = sbr.rel (0) target = $region13
    $region12: #{tpu_custom_call.1} parent=1 // pred_region
      _
    $region13: #{tpu_custom_call.1} parent=1 // pred_fallthru
      _
    // Predicated region
    $region14: #{tpu_custom_call.1} parent=1 // pred_check
      _
    $region15: #{tpu_custom_call.1} parent=1 // pred_check_branch
      %43 = sbr.rel (0) target = $region17
    $region16: #{tpu_custom_call.1} parent=1 // pred_region
      %s45 = ssub.s32 2048, 2048
      %46 = vsyncadd [#allocation6], %s45
      %s47 = sshll.u32 [#allocation7], 4
      %s48 = int_to_ptr.vmem [resolvable:$true] %s47
      %53 = dma.hbm_to_vmem [thread:$0]  %s3, 2048, %s48, [#allocation6], 64, 64, 4
    $region17: #{tpu_custom_call.1} parent=1 // pred_fallthru
      _
    // Predicated region
    $region18: #{tpu_custom_call.1} parent=1 // pred_check
      _
    $region19: #{tpu_custom_call.1} parent=1 // pred_check_branch
      %55 = sbr.rel (0) target = $region21
    $region20: #{tpu_custom_call.1} parent=1 // pred_region
      _
    $region21: #{tpu_custom_call.1} parent=1 // pred_fallthru
      _
    // Predicated region
    $region22: #{tpu_custom_call.1} parent=1 // pred_check
      _
    $region23: #{tpu_custom_call.1} parent=1 // pred_check_branch
      %57 = sbr.rel (0) target = $region25
    $region24: #{tpu_custom_call.1} parent=1 // pred_region
      %s59 = ssub.s32 1024, 1024
      %60 = vsyncadd [#allocation9], %s59
      %s61 = sshll.u32 [#allocation8], 4
      %s62 = int_to_ptr.vmem [resolvable:$true] %s61
      %67 = dma.hbm_to_vmem [thread:$0]  %s5, 1024, %s62, [#allocation9], 64, 64, 4
    $region25: #{tpu_custom_call.1} parent=1 // pred_fallthru
      _
    // Predicated region
    $region26: #{tpu_custom_call.1} parent=1 // pred_check
      _
    $region27: #{tpu_custom_call.1} parent=1 // pred_check_branch
      %69 = sbr.rel (0) target = $region29
    $region28: #{tpu_custom_call.1} parent=1 // pred_region
      _
    $region29: #{tpu_custom_call.1} parent=1 // pred_fallthru
      _
    // Predicated region
    $region30: #{tpu_custom_call.1} parent=1 // pred_check
      _
    $region31: #{tpu_custom_call.1} parent=1 // pred_check_branch
      %71 = sbr.rel (0) target = $region33
    $region32: #{tpu_custom_call.1} parent=1 // pred_region
      %72 = dma.done [#allocation3], 128
    $region33: #{tpu_custom_call.1} parent=1 // pred_fallthru
      _
    // Predicated region
    $region34: #{tpu_custom_call.1} parent=1 // pred_check
      _
    $region35: #{tpu_custom_call.1} parent=1 // pred_check_branch
      %74 = sbr.rel (0) target = $region37
    $region36: #{tpu_custom_call.1} parent=1 // pred_region
      %75 = dma.done [#allocation6], 128
    $region37: #{tpu_custom_call.1} parent=1 // pred_fallthru
      _
    // Predicated region
    $region38: #{tpu_custom_call.1} parent=1 // pred_check
      _
    $region39: #{tpu_custom_call.1} parent=1 // pred_check_branch
      %77 = sbr.rel (0) target = $region41
    $region40: #{tpu_custom_call.1} parent=1 // pred_region
      %78 = dma.done [#allocation6], 2048
    $region41: #{tpu_custom_call.1} parent=1 // pred_fallthru
      _
    // Predicated region
    $region42: #{tpu_custom_call.1} parent=1 // pred_check
      _
    $region43: #{tpu_custom_call.1} parent=1 // pred_check_branch
      %80 = sbr.rel (0) target = $region45
    $region44: #{tpu_custom_call.1} parent=1 // pred_region
      %81 = dma.done [#allocation9], 1024
    $region45: #{tpu_custom_call.1} parent=1 // pred_fallthru
      _
    %v83 = vld [vmem:[#allocation2] sm:$0xf]
    %v84 = vld [vmem:[#allocation2 + $0x4] sm:$0xf]
    %v85 = vld [vmem:[#allocation5] sm:$0xf]
    %v86 = vld [vmem:[#allocation5 + $0x4] sm:$0xf]
    %v87 = vld [vmem:[%s2] sm:$0x1]
    %v89 = vlaneseq
    %v90 = vshrl.u32 %v89, 7
    %v91 = vsub.s32 0, %v90
    %v92 = vrot.slane %v87, %v91
    %v96 = vunpack.c.l.b16 %v83
    %v97 = vunpack.c.l.b16 %v84
    %v98 = vpack.c.b16 %v97, %v96
    %v101 = vunpack.c.l.b16 %v85
    %v102 = vunpack.c.l.b16 %v86
    %v103 = vpack.c.b16 %v102, %v101
    %vm105 = vcmask 130048
    %v107 = vsel %vm105, %v98, 0
    %109 = vmatprep.subr.bf16.mxu0 0
    %110 = vmatpush1.bf16.msra.mxu0 %v103
    %111 = vmatprep.subr.bf16.mxu0 0
    %112 = vmatpush1.bf16.msra.mxu0 0
    %113 = vmatprep.subr.bf16.mxu0 0
    %114 = vmatpush1.bf16.msra.mxu0 0
    %115 = vmatprep.subr.bf16.mxu0 0
    %116 = vmatpush1.bf16.msra.mxu0 0
    %117 = vmatprep.subr.bf16.mxu0 0
    %118 = vmatpush1.bf16.msra.mxu0 0
    %119 = vmatprep.subr.bf16.mxu0 0
    %120 = vmatpush1.bf16.msra.mxu0 0
    %121 = vmatprep.subr.bf16.mxu0 0
    %122 = vmatpush1.bf16.msra.mxu0 0
    %123 = vmatprep.subr.bf16.mxu0 0
    %124 = vmatpush1.bf16.msra.mxu0 0
    %125 = vmatprep.subr.bf16.mxu0 0
    %126 = vmatpush1.bf16.msra.mxu0 0
    %127 = vmatprep.subr.bf16.mxu0 0
    %128 = vmatpush1.bf16.msra.mxu0 0
    %129 = vmatprep.subr.bf16.mxu0 0
    %130 = vmatpush1.bf16.msra.mxu0 0
    %131 = vmatprep.subr.bf16.mxu0 0
    %132 = vmatpush1.bf16.msra.mxu0 0
    %133 = vmatprep.subr.bf16.mxu0 0
    %134 = vmatpush1.bf16.msra.mxu0 0
    %135 = vmatprep.subr.bf16.mxu0 0
    %136 = vmatpush1.bf16.msra.mxu0 0
    %137 = vmatprep.subr.bf16.mxu0 0
    %138 = vmatpush1.bf16.msra.mxu0 0
    %139 = vmatprep.subr.bf16.mxu0 0
    %140 = vmatpush1.bf16.msra.mxu0 0
    %141 = vmatprep.mubr.bf16.mxu0 0
    %142 = vmatmul.mubr.bf16.gmra.mrb[0].mxu0 %v107
    %v143 = vpop.f32.mrb[0].mxu0
    %v144 = vadd.f32 %v92, %v143
    %v145 = vpop.f32.mrb[0].mxu0
    %v146 = vpop.f32.mrb[0].mxu0
    %v147 = vadd.f32 %v92, %v146
    %v148 = vpop.f32.mrb[0].mxu0
    %149 = vdwg.mxu0
    %v150 = vmax.f32 %v144, 0.0
    %v151 = vmax.f32 %v147, 0.0
    %v152 = vpack.c.bf16 %v151, %v150
    %v153 = vld [vmem:[#allocation7] sm:$0xf]
    %v154 = vld [vmem:[#allocation7 + $0x4] sm:$0xf]
    %v155 = vld [vmem:[#allocation7 + $0x8] sm:$0xf]
    %v156 = vld [vmem:[#allocation7 + $0xc] sm:$0xf]
    %v157 = vld [vmem:[#allocation7 + $0x10] sm:$0xf]
    %v158 = vld [vmem:[#allocation7 + $0x14] sm:$0xf]
    %v159 = vld [vmem:[#allocation7 + $0x18] sm:$0xf]
    %v160 = vld [vmem:[#allocation7 + $0x1c] sm:$0xf]
    %v161 = vld [vmem:[#allocation7 + $0x20] sm:$0xf]
    %v162 = vld [vmem:[#allocation7 + $0x24] sm:$0xf]
    %v163 = vld [vmem:[#allocation7 + $0x28] sm:$0xf]
    %v164 = vld [vmem:[#allocation7 + $0x2c] sm:$0xf]
    %v165 = vld [vmem:[#allocation7 + $0x30] sm:$0xf]
    %v166 = vld [vmem:[#allocation7 + $0x34] sm:$0xf]
    %v167 = vld [vmem:[#allocation7 + $0x38] sm:$0xf]
    %v168 = vld [vmem:[#allocation7 + $0x3c] sm:$0xf]
    %v169 = vld [vmem:[%s4] sm:$0x1]
    %v171 = vlaneseq
    %v172 = vshrl.u32 %v171, 7
    %v173 = vsub.s32 0, %v172
    %v174 = vrot.slane %v169, %v173
    %v192 = vunpack.c.l.b16 %v153
    %v193 = vunpack.c.l.b16 %v154
    %v194 = vunpack.c.l.b16 %v155
    %v195 = vunpack.c.l.b16 %v156
    %v196 = vunpack.c.l.b16 %v157
    %v197 = vunpack.c.l.b16 %v158
    %v198 = vunpack.c.l.b16 %v159
    %v199 = vunpack.c.l.b16 %v160
    %v200 = vunpack.c.l.b16 %v161
    %v201 = vunpack.c.l.b16 %v162
    %v202 = vunpack.c.l.b16 %v163
    %v203 = vunpack.c.l.b16 %v164
    %v204 = vunpack.c.l.b16 %v165
    %v205 = vunpack.c.l.b16 %v166
    %v206 = vunpack.c.l.b16 %v167
    %v207 = vunpack.c.l.b16 %v168
    %v208 = vpack.c.b16 %v193, %v192
    %v209 = vpack.c.b16 %v195, %v194
    %v210 = vpack.c.b16 %v197, %v196
    %v211 = vpack.c.b16 %v199, %v198
    %v212 = vpack.c.b16 %v201, %v200
    %v213 = vpack.c.b16 %v203, %v202
    %v214 = vpack.c.b16 %v205, %v204
    %v215 = vpack.c.b16 %v207, %v206
    %224 = vmatprep.subr.bf16.mxu0 0
    %225 = vmatpush1.bf16.msra.mxu0 %v208
    %226 = vmatprep.subr.bf16.mxu0 0
    %227 = vmatpush1.bf16.msra.mxu0 %v209
    %228 = vmatprep.subr.bf16.mxu0 0
    %229 = vmatpush1.bf16.msra.mxu0 %v210
    %230 = vmatprep.subr.bf16.mxu0 0
    %231 = vmatpush1.bf16.msra.mxu0 %v211
    %232 = vmatprep.subr.bf16.mxu0 0
    %233 = vmatpush1.bf16.msra.mxu0 %v212
    %234 = vmatprep.subr.bf16.mxu0 0
    %235 = vmatpush1.bf16.msra.mxu0 %v213
    %236 = vmatprep.subr.bf16.mxu0 0
    %237 = vmatpush1.bf16.msra.mxu0 %v214
    %238 = vmatprep.subr.bf16.mxu0 0
    %239 = vmatpush1.bf16.msra.mxu0 %v215
    %240 = vmatprep.subr.bf16.mxu0 0
    %241 = vmatpush1.bf16.msra.mxu0 0
    %242 = vmatprep.subr.bf16.mxu0 0
    %243 = vmatpush1.bf16.msra.mxu0 0
    %244 = vmatprep.subr.bf16.mxu0 0
    %245 = vmatpush1.bf16.msra.mxu0 0
    %246 = vmatprep.subr.bf16.mxu0 0
    %247 = vmatpush1.bf16.msra.mxu0 0
    %248 = vmatprep.subr.bf16.mxu0 0
    %249 = vmatpush1.bf16.msra.mxu0 0
    %250 = vmatprep.subr.bf16.mxu0 0
    %251 = vmatpush1.bf16.msra.mxu0 0
    %252 = vmatprep.subr.bf16.mxu0 0
    %253 = vmatpush1.bf16.msra.mxu0 0
    %254 = vmatprep.subr.bf16.mxu0 0
    %255 = vmatpush1.bf16.msra.mxu0 0
    %256 = vmatprep.mubr.bf16.mxu0 0
    %257 = vmatmul.mubr.bf16.gmra.mrb[0].mxu0 %v152
    %v258 = vpop.f32.mrb[0].mxu0
    %v259 = vadd.f32 %v174, %v258
    %v260 = vpop.f32.mrb[0].mxu0
    %v261 = vpop.f32.mrb[0].mxu0
    %v262 = vadd.f32 %v174, %v261
    %v263 = vpop.f32.mrb[0].mxu0
    %264 = vdwg.mxu0
    %v265 = vmax.f32 %v259, 0.0
    %v266 = vmax.f32 %v262, 0.0
    %v267 = vpack.c.bf16 %v266, %v265
    %s268 = scalar_lea.vmem [#allocation7], 64
    %v269 = vld [vmem:[%s268] sm:$0xf]
    %v270 = vld [vmem:[%s268 + $0x4] sm:$0xf]
    %v271 = vld [vmem:[%s268 + $0x8] sm:$0xf]
    %v272 = vld [vmem:[%s268 + $0xc] sm:$0xf]
    %v273 = vld [vmem:[%s268 + $0x10] sm:$0xf]
    %v274 = vld [vmem:[%s268 + $0x14] sm:$0xf]
    %v275 = vld [vmem:[%s268 + $0x18] sm:$0xf]
    %v276 = vld [vmem:[%s268 + $0x1c] sm:$0xf]
    %v277 = vld [vmem:[%s268 + $0x20] sm:$0xf]
    %v278 = vld [vmem:[%s268 + $0x24] sm:$0xf]
    %v279 = vld [vmem:[%s268 + $0x28] sm:$0xf]
    %v280 = vld [vmem:[%s268 + $0x2c] sm:$0xf]
    %v281 = vld [vmem:[%s268 + $0x30] sm:$0xf]
    %v282 = vld [vmem:[%s268 + $0x34] sm:$0xf]
    %v283 = vld [vmem:[%s268 + $0x38] sm:$0xf]
    %v284 = vld [vmem:[%s268 + $0x3c] sm:$0xf]
    %s285 = scalar_lea.vmem %s4, 1
    %v286 = vld [vmem:[%s285] sm:$0x1]
    %v288 = vlaneseq
    %v289 = vshrl.u32 %v288, 7
    %v290 = vsub.s32 0, %v289
    %v291 = vrot.slane %v286, %v290
    %v309 = vunpack.c.l.b16 %v269
    %v310 = vunpack.c.l.b16 %v270
    %v311 = vunpack.c.l.b16 %v271
    %v312 = vunpack.c.l.b16 %v272
    %v313 = vunpack.c.l.b16 %v273
    %v314 = vunpack.c.l.b16 %v274
    %v315 = vunpack.c.l.b16 %v275
    %v316 = vunpack.c.l.b16 %v276
    %v317 = vunpack.c.l.b16 %v277
    %v318 = vunpack.c.l.b16 %v278
    %v319 = vunpack.c.l.b16 %v279
    %v320 = vunpack.c.l.b16 %v280
    %v321 = vunpack.c.l.b16 %v281
    %v322 = vunpack.c.l.b16 %v282
    %v323 = vunpack.c.l.b16 %v283
    %v324 = vunpack.c.l.b16 %v284
    %v325 = vpack.c.b16 %v310, %v309
    %v326 = vpack.c.b16 %v312, %v311
    %v327 = vpack.c.b16 %v314, %v313
    %v328 = vpack.c.b16 %v316, %v315
    %v329 = vpack.c.b16 %v318, %v317
    %v330 = vpack.c.b16 %v320, %v319
    %v331 = vpack.c.b16 %v322, %v321
    %v332 = vpack.c.b16 %v324, %v323
    %341 = vmatprep.subr.bf16.mxu0 0
    %342 = vmatpush1.bf16.msra.mxu0 %v325
    %343 = vmatprep.subr.bf16.mxu0 0
    %344 = vmatpush1.bf16.msra.mxu0 %v326
    %345 = vmatprep.subr.bf16.mxu0 0
    %346 = vmatpush1.bf16.msra.mxu0 %v327
    %347 = vmatprep.subr.bf16.mxu0 0
    %348 = vmatpush1.bf16.msra.mxu0 %v328
    %349 = vmatprep.subr.bf16.mxu0 0
    %350 = vmatpush1.bf16.msra.mxu0 %v329
    %351 = vmatprep.subr.bf16.mxu0 0
    %352 = vmatpush1.bf16.msra.mxu0 %v330
    %353 = vmatprep.subr.bf16.mxu0 0
    %354 = vmatpush1.bf16.msra.mxu0 %v331
    %355 = vmatprep.subr.bf16.mxu0 0
    %356 = vmatpush1.bf16.msra.mxu0 %v332
    %357 = vmatprep.subr.bf16.mxu0 0
    %358 = vmatpush1.bf16.msra.mxu0 0
    %359 = vmatprep.subr.bf16.mxu0 0
    %360 = vmatpush1.bf16.msra.mxu0 0
    %361 = vmatprep.subr.bf16.mxu0 0
    %362 = vmatpush1.bf16.msra.mxu0 0
    %363 = vmatprep.subr.bf16.mxu0 0
    %364 = vmatpush1.bf16.msra.mxu0 0
    %365 = vmatprep.subr.bf16.mxu0 0
    %366 = vmatpush1.bf16.msra.mxu0 0
    %367 = vmatprep.subr.bf16.mxu0 0
    %368 = vmatpush1.bf16.msra.mxu0 0
    %369 = vmatprep.subr.bf16.mxu0 0
    %370 = vmatpush1.bf16.msra.mxu0 0
    %371 = vmatprep.subr.bf16.mxu0 0
    %372 = vmatpush1.bf16.msra.mxu0 0
    %373 = vmatprep.mubr.bf16.mxu0 0
    %374 = vmatmul.mubr.bf16.gmra.mrb[0].mxu0 %v267
    %v375 = vpop.f32.mrb[0].mxu0
    %v376 = vadd.f32 %v291, %v375
    %v377 = vpop.f32.mrb[0].mxu0
    %v378 = vpop.f32.mrb[0].mxu0
    %v379 = vadd.f32 %v291, %v378
    %v380 = vpop.f32.mrb[0].mxu0
    %381 = vdwg.mxu0
    %v382 = vmax.f32 %v376, 0.0
    %v383 = vmax.f32 %v379, 0.0
    %v384 = vpack.c.bf16 %v383, %v382
    %v385 = vld [vmem:[#allocation8] sm:$0xf]
    %v386 = vld [vmem:[#allocation8 + $0x4] sm:$0xf]
    %v387 = vld [vmem:[#allocation8 + $0x8] sm:$0xf]
    %v388 = vld [vmem:[#allocation8 + $0xc] sm:$0xf]
    %v389 = vld [vmem:[#allocation8 + $0x10] sm:$0xf]
    %v390 = vld [vmem:[#allocation8 + $0x14] sm:$0xf]
    %v391 = vld [vmem:[#allocation8 + $0x18] sm:$0xf]
    %v392 = vld [vmem:[#allocation8 + $0x1c] sm:$0xf]
    %v393 = vld [vmem:[#allocation8 + $0x20] sm:$0xf]
    %v394 = vld [vmem:[#allocation8 + $0x24] sm:$0xf]
    %v395 = vld [vmem:[#allocation8 + $0x28] sm:$0xf]
    %v396 = vld [vmem:[#allocation8 + $0x2c] sm:$0xf]
    %v397 = vld [vmem:[#allocation8 + $0x30] sm:$0xf]
    %v398 = vld [vmem:[#allocation8 + $0x34] sm:$0xf]
    %v399 = vld [vmem:[#allocation8 + $0x38] sm:$0xf]
    %v400 = vld [vmem:[#allocation8 + $0x3c] sm:$0xf]
    %v401 = vld [vmem:[%s6] sm:$0x1]
    %v403 = vlaneseq
    %v404 = vshrl.u32 %v403, 7
    %v405 = vsub.s32 0, %v404
    %v406 = vrot.slane %v401, %v405
    %v424 = vunpack.c.l.b16 %v385
    %v425 = vunpack.c.l.b16 %v386
    %v426 = vunpack.c.l.b16 %v387
    %v427 = vunpack.c.l.b16 %v388
    %v428 = vunpack.c.l.b16 %v389
    %v429 = vunpack.c.l.b16 %v390
    %v430 = vunpack.c.l.b16 %v391
    %v431 = vunpack.c.l.b16 %v392
    %v432 = vunpack.c.l.b16 %v393
    %v433 = vunpack.c.l.b16 %v394
    %v434 = vunpack.c.l.b16 %v395
    %v435 = vunpack.c.l.b16 %v396
    %v436 = vunpack.c.l.b16 %v397
    %v437 = vunpack.c.l.b16 %v398
    %v438 = vunpack.c.l.b16 %v399
    %v439 = vunpack.c.l.b16 %v400
    %v440 = vpack.c.b16 %v425, %v424
    %v441 = vpack.c.b16 %v427, %v426
    %v442 = vpack.c.b16 %v429, %v428
    %v443 = vpack.c.b16 %v431, %v430
    %v444 = vpack.c.b16 %v433, %v432
    %v445 = vpack.c.b16 %v435, %v434
    %v446 = vpack.c.b16 %v437, %v436
    %v447 = vpack.c.b16 %v439, %v438
    %456 = vmatprep.subr.bf16.mxu0 0
    %457 = vmatpush1.bf16.msra.mxu0 %v440
    %458 = vmatprep.subr.bf16.mxu0 0
    %459 = vmatpush1.bf16.msra.mxu0 %v441
    %460 = vmatprep.subr.bf16.mxu0 0
    %461 = vmatpush1.bf16.msra.mxu0 %v442
    %462 = vmatprep.subr.bf16.mxu0 0
    %463 = vmatpush1.bf16.msra.mxu0 %v443
    %464 = vmatprep.subr.bf16.mxu0 0
    %465 = vmatpush1.bf16.msra.mxu0 %v444
    %466 = vmatprep.subr.bf16.mxu0 0
    %467 = vmatpush1.bf16.msra.mxu0 %v445
    %468 = vmatprep.subr.bf16.mxu0 0
    %469 = vmatpush1.bf16.msra.mxu0 %v446
    %470 = vmatprep.subr.bf16.mxu0 0
    %471 = vmatpush1.bf16.msra.mxu0 %v447
    %472 = vmatprep.subr.bf16.mxu0 0
    %473 = vmatpush1.bf16.msra.mxu0 0
    %474 = vmatprep.subr.bf16.mxu0 0
    %475 = vmatpush1.bf16.msra.mxu0 0
    %476 = vmatprep.subr.bf16.mxu0 0
    %477 = vmatpush1.bf16.msra.mxu0 0
    %478 = vmatprep.subr.bf16.mxu0 0
    %479 = vmatpush1.bf16.msra.mxu0 0
    %480 = vmatprep.subr.bf16.mxu0 0
    %481 = vmatpush1.bf16.msra.mxu0 0
    %482 = vmatprep.subr.bf16.mxu0 0
    %483 = vmatpush1.bf16.msra.mxu0 0
    %484 = vmatprep.subr.bf16.mxu0 0
    %485 = vmatpush1.bf16.msra.mxu0 0
    %486 = vmatprep.subr.bf16.mxu0 0
    %487 = vmatpush1.bf16.msra.mxu0 0
    %488 = vmatprep.mubr.bf16.mxu0 0
    %489 = vmatmul.mubr.bf16.gmra.mrb[0].mxu0 %v384
    %v490 = vpop.f32.mrb[0].mxu0
    %v491 = vadd.f32 %v406, %v490
    %v492 = vpop.f32.mrb[0].mxu0
    %v493 = vpop.f32.mrb[0].mxu0
    %v494 = vadd.f32 %v406, %v493
    %v495 = vpop.f32.mrb[0].mxu0
    %496 = vdwg.mxu0
    %497 = vst [vmem:[#allocation10] sm:$0xff] %v491
    %498 = vst [vmem:[#allocation10 + $0x8] sm:$0xff] %v494
    // Predicated region
    $region46: #{tpu_custom_call.1} parent=1 // pred_check
      _
    $region47: #{tpu_custom_call.1} parent=1 // pred_check_branch
      %500 = sbr.rel (0) target = $region49
    $region48: #{tpu_custom_call.1} parent=1 // pred_region
      %s502 = ssub.s32 256, 256
      %503 = vsyncadd [#allocation4], %s502
      %s504 = sshll.u32 [#allocation10], 4
      %s505 = int_to_ptr.vmem [resolvable:$true] %s504
      %510 = dma.vmem_to_hbm [thread:$0]  %s505, 256, %s7, [#allocation4], 128, 128, 8
    $region49: #{tpu_custom_call.1} parent=1 // pred_fallthru
      _
    // Predicated region
    $region50: #{tpu_custom_call.1} parent=1 // pred_check
      _
    $region51: #{tpu_custom_call.1} parent=1 // pred_check_branch
      %512 = sbr.rel (0) target = $region53
    $region52: #{tpu_custom_call.1} parent=1 // pred_region
      %513 = dma.done [#allocation4], 256
    $region53: #{tpu_custom_call.1} parent=1 // pred_fallthru
      _
    %514 = vsyncpa [#allocation3], 1
    %515 = vsyncpa [#allocation6], 1
    %516 = vsyncpa [#allocation9], 1
    %517 = vsyncpa [#allocation4], 1

</llo_original>
